<compile_context>
chip_gen: v7x
topology: tpu7x:2x2x1
jax: 0.10.0
libtpu: 0.0.40
codegen_flags: <defaults>
</compile_context>

<pallas_src>
import jax
import jax.numpy as jnp
from jax.experimental import pallas as pl
from jax.experimental.pallas import tpu as pltpu


def _edge_kernel(x_ref, halo_ref, out_ref):
    # x_ref    : VMEM (TH, W)      -- TH image rows of one batch item
    # halo_ref : VMEM (2, W)       -- reflect-correct row above / below the tile
    # out_ref  : VMEM (2, TH, W)   -- |Gx|, |Gy| for those rows
    x = x_ref[...]                      # (TH, W) float32
    top = halo_ref[0:1, :]              # (1, W) row i-1 for the first tile row
    bot = halo_ref[1:2, :]              # (1, W) row i+1 for the last tile row
    TH, W = x.shape

    # Vertical (sublane) neighbors, reflect handled by the halo rows.
    x_up = jnp.concatenate([top, x[:TH - 1, :]], axis=0)   # x[i-1, j]
    x_dn = jnp.concatenate([x[1:, :], bot], axis=0)        # x[i+1, j]

    # Separable vertical pass, constant weights folded (zeros skipped, *2 -> add).
    s = (x_up + x_dn) + (x + x)         # [1, 2, 1]^T smoothing
    d = x_up - x_dn                     # [1, 0, -1]^T difference

    # Horizontal (lane) ±1 shifts with in-kernel reflect border.
    def shl(a):  # a[:, j-1]; reflect at j=0 -> a[:, 1]
        return jnp.concatenate([a[:, 1:2], a[:, :W - 1]], axis=1)

    def shr(a):  # a[:, j+1]; reflect at j=W-1 -> a[:, W-2]
        return jnp.concatenate([a[:, 1:], a[:, W - 2:W - 1]], axis=1)

    gx = shl(s) - shr(s)                # ⊗ [1, 0, -1]
    gy = (shl(d) + shr(d)) + (d + d)    # ⊗ [1, 2, 1]

    out_ref[0] = jnp.abs(gx).astype(out_ref.dtype)
    out_ref[1] = jnp.abs(gy).astype(out_ref.dtype)


def _pick_row_tile(H, W, budget_bytes):
    # Double-buffered f32 working set per grid step ≈ (1 input + 2 output)
    # TH×W slabs × 2 buffers -> ~24 bytes / pixel (halo rows are negligible).
    per_row = 24 * W
    if per_row * H <= budget_bytes:
        return H                        # whole image per grid step is fine
    th = (H // 8) * 8
    while th >= 8:
        if H % th == 0 and per_row * th <= budget_bytes:
            return th
        th -= 8
    # TODO(synk): manual halo-DMA row tiling for shapes with no multiple-of-8
    # divisor of H that fits the budget; fall back to whole-image blocks.
    return H


def edge_forward(img, *, row_tile=None, vmem_budget_bytes=8 << 20):
    """img: (B, 1, H, W) float32 -> (B, 2, H, W) = |Sobel(img)| (reflect pad)."""
    B, C, H, W = img.shape
    assert C == 1
    assert H >= 2 and W >= 2, "reflect padding needs spatial dims >= 2"
    x = img[:, 0, :, :].astype(jnp.float32)        # (B, H, W) — no padded HBM copy

    TH = row_tile if row_tile is not None else _pick_row_tile(H, W, vmem_budget_bytes)
    assert H % TH == 0 and (TH == H or TH % 8 == 0), "bad row tile"
    nrt = H // TH

    # Tiny (B, nrt, 2, W) array holding, for each row tile, the reflect-correct
    # row just above and just below it (≈ 2/TH of the image in extra traffic).
    t = jnp.arange(nrt)
    top_idx = jnp.where(t == 0, 1, t * TH - 1)         # reflect: row -1 -> row 1
    bot_idx = jnp.where(t == nrt - 1, H - 2, (t + 1) * TH)  # reflect: row H -> H-2
    halo = x[:, jnp.stack([top_idx, bot_idx], axis=1), :]   # (B, nrt, 2, W)

    out = pl.pallas_call(
        _edge_kernel,
        out_shape=jax.ShapeDtypeStruct((B, 2, H, W), jnp.float32),
        grid=(B, nrt),
        in_specs=[
            pl.BlockSpec((None, TH, W), lambda b, r: (b, r, 0)),
            pl.BlockSpec((None, None, 2, W), lambda b, r: (b, r, 0, 0)),
        ],
        out_specs=pl.BlockSpec((None, 2, TH, W), lambda b, r: (b, 0, r, 0)),
        compiler_params=pltpu.CompilerParams(
            dimension_semantics=("parallel", "parallel")),
    )(x, halo)
    return out


def _make_sobel_weight():
    # Same frozen parameters as Edge.__init__ (used only for the reference check;
    # the kernel bakes these constants into the separable stencil).
    Gx = jnp.array([[1.0, 0.0, -1.0],
                    [2.0, 0.0, -2.0],
                    [1.0, 0.0, -1.0]], dtype=jnp.float32)
    Gy = jnp.array([[1.0, 2.0, 1.0],
                    [0.0, 0.0, 0.0],
                    [-1.0, -2.0, -1.0]], dtype=jnp.float32)
    G = jnp.stack([Gx, Gy], axis=0)          # (2, 3, 3)
    return G[:, None, :, :]                  # (2, 1, 3, 3)


if __name__ == "__main__":
    key = jax.random.PRNGKey(0)
    B, C, H, W = 2, 1, 16, 16
    img = jax.random.normal(key, (B, C, H, W), dtype=jnp.float32)

    out = jax.block_until_ready(edge_forward(img))
    assert out.shape == (B, 2, H, W)

    sobel_w = _make_sobel_weight()

    def ref_edge(im):
        xpad = jnp.pad(im, ((0, 0), (0, 0), (1, 1), (1, 1)), mode="reflect")
        r = jax.lax.conv_general_dilated(
            xpad, sobel_w, window_strides=(1, 1), padding="VALID",
            dimension_numbers=("NCHW", "OIHW", "NCHW"))
        return jnp.abs(r)

    assert jnp.allclose(out, ref_edge(img), atol=1e-5), "mismatch vs reference"

    # Also exercise the row-tiled (halo) path: 32 rows in tiles of 8.
    key2, _ = jax.random.split(key)
    img2 = jax.random.normal(key2, (2, 1, 32, 16), dtype=jnp.float32)
    out2 = jax.block_until_ready(edge_forward(img2, row_tile=8))
    assert jnp.allclose(out2, ref_edge(img2), atol=1e-5), "mismatch (tiled path)"

    print("KERNEL_OK")
</pallas_src>

<mosaic_0001>
module attributes {stable_mosaic.version = 11 : i64} {
  func.func @_edge_kernel(%arg0: i32, %arg1: i32, %arg2: memref<1x16x16xf32, #tpu.memory_space<vmem>>, %arg3: memref<1x1x2x16xf32, #tpu.memory_space<vmem>>, %arg4: memref<1x2x16x16xf32, #tpu.memory_space<vmem>>) attributes {dimension_semantics = [#tpu.dimension_semantics<parallel>, #tpu.dimension_semantics<parallel>], iteration_bounds = array<i64: 2, 1>, scalar_prefetch = 0 : i64, scratch_operands = 0 : i64, tpu.core_type = #tpu.core_type<tc>, window_params = [{transform_indices = @transform_0, window_bounds = array<i64: 1, 16, 16>}, {transform_indices = @transform_1, window_bounds = array<i64: 1, 1, 2, 16>}, {transform_indices = @transform_2, window_bounds = array<i64: 1, 2, 16, 16>}]} {
    %c0 = arith.constant 0 : index
    %c0_0 = arith.constant 0 : index
    %c0_1 = arith.constant 0 : index
    %0 = vector.load %arg2[%c0, %c0_0, %c0_1] : memref<1x16x16xf32, #tpu.memory_space<vmem>>, vector<1x16x16xf32>
    %1 = vector.shape_cast %0 : vector<1x16x16xf32> to vector<16x16xf32>
    %c0_2 = arith.constant 0 : index
    %c0_3 = arith.constant 0 : index
    %c0_4 = arith.constant 0 : index
    %c0_5 = arith.constant 0 : index
    %2 = vector.load %arg3[%c0_2, %c0_3, %c0_4, %c0_5] : memref<1x1x2x16xf32, #tpu.memory_space<vmem>>, vector<1x1x1x16xf32>
    %3 = vector.shape_cast %2 : vector<1x1x1x16xf32> to vector<1x16xf32>
    %c0_6 = arith.constant 0 : index
    %c0_7 = arith.constant 0 : index
    %c1 = arith.constant 1 : index
    %c0_8 = arith.constant 0 : index
    %4 = vector.load %arg3[%c0_6, %c0_7, %c1, %c0_8] : memref<1x1x2x16xf32, #tpu.memory_space<vmem>>, vector<1x1x1x16xf32>
    %5 = vector.shape_cast %4 : vector<1x1x1x16xf32> to vector<1x16xf32>
    %6 = vector.extract_strided_slice %1 {offsets = [0, 0], sizes = [15, 16], strides = [1, 1]} : vector<16x16xf32> to vector<15x16xf32>
    %7 = tpu.concatenate %3, %6 in 0 : vector<1x16xf32>, vector<15x16xf32> -> vector<16x16xf32>
    %8 = vector.extract_strided_slice %1 {offsets = [1, 0], sizes = [15, 16], strides = [1, 1]} : vector<16x16xf32> to vector<15x16xf32>
    %9 = tpu.concatenate %8, %5 in 0 : vector<15x16xf32>, vector<1x16xf32> -> vector<16x16xf32>
    %10 = arith.addf %7, %9 : vector<16x16xf32>
    %11 = arith.addf %1, %1 : vector<16x16xf32>
    %12 = arith.addf %10, %11 : vector<16x16xf32>
    %13 = arith.subf %7, %9 : vector<16x16xf32>
    %14 = vector.extract_strided_slice %12 {offsets = [0, 1], sizes = [16, 1], strides = [1, 1]} : vector<16x16xf32> to vector<16x1xf32>
    %15 = vector.extract_strided_slice %12 {offsets = [0, 0], sizes = [16, 15], strides = [1, 1]} : vector<16x16xf32> to vector<16x15xf32>
    %16 = tpu.concatenate %14, %15 in 1 : vector<16x1xf32>, vector<16x15xf32> -> vector<16x16xf32>
    %17 = vector.extract_strided_slice %12 {offsets = [0, 1], sizes = [16, 15], strides = [1, 1]} : vector<16x16xf32> to vector<16x15xf32>
    %18 = vector.extract_strided_slice %12 {offsets = [0, 14], sizes = [16, 1], strides = [1, 1]} : vector<16x16xf32> to vector<16x1xf32>
    %19 = tpu.concatenate %17, %18 in 1 : vector<16x15xf32>, vector<16x1xf32> -> vector<16x16xf32>
    %20 = arith.subf %16, %19 : vector<16x16xf32>
    %21 = vector.extract_strided_slice %13 {offsets = [0, 1], sizes = [16, 1], strides = [1, 1]} : vector<16x16xf32> to vector<16x1xf32>
    %22 = vector.extract_strided_slice %13 {offsets = [0, 0], sizes = [16, 15], strides = [1, 1]} : vector<16x16xf32> to vector<16x15xf32>
    %23 = tpu.concatenate %21, %22 in 1 : vector<16x1xf32>, vector<16x15xf32> -> vector<16x16xf32>
    %24 = vector.extract_strided_slice %13 {offsets = [0, 1], sizes = [16, 15], strides = [1, 1]} : vector<16x16xf32> to vector<16x15xf32>
    %25 = vector.extract_strided_slice %13 {offsets = [0, 14], sizes = [16, 1], strides = [1, 1]} : vector<16x16xf32> to vector<16x1xf32>
    %26 = tpu.concatenate %24, %25 in 1 : vector<16x15xf32>, vector<16x1xf32> -> vector<16x16xf32>
    %27 = arith.addf %23, %26 : vector<16x16xf32>
    %28 = arith.addf %13, %13 : vector<16x16xf32>
    %29 = arith.addf %27, %28 : vector<16x16xf32>
    %30 = math.absf %20 : vector<16x16xf32>
    %c0_9 = arith.constant 0 : index
    %c0_10 = arith.constant 0 : index
    %c0_11 = arith.constant 0 : index
    %c0_12 = arith.constant 0 : index
    %31 = vector.load %arg4[%c0_9, %c0_10, %c0_11, %c0_12] : memref<1x2x16x16xf32, #tpu.memory_space<vmem>>, vector<1x1x16x16xf32>
    %32 = vector.shape_cast %31 : vector<1x1x16x16xf32> to vector<16x16xf32>
    %33 = vector.shape_cast %30 : vector<16x16xf32> to vector<1x1x16x16xf32>
    tpu.vector_store %arg4[%c0_9, %c0_10, %c0_11, %c0_12], %33 {strides = array<i32>} : memref<1x2x16x16xf32, #tpu.memory_space<vmem>>, vector<1x1x16x16xf32>,
    %34 = math.absf %29 : vector<16x16xf32>
    %c0_13 = arith.constant 0 : index
    %c1_14 = arith.constant 1 : index
    %c0_15 = arith.constant 0 : index
    %c0_16 = arith.constant 0 : index
    %35 = vector.load %arg4[%c0_13, %c1_14, %c0_15, %c0_16] : memref<1x2x16x16xf32, #tpu.memory_space<vmem>>, vector<1x1x16x16xf32>
    %36 = vector.shape_cast %35 : vector<1x1x16x16xf32> to vector<16x16xf32>
    %37 = vector.shape_cast %34 : vector<16x16xf32> to vector<1x1x16x16xf32>
    tpu.vector_store %arg4[%c0_13, %c1_14, %c0_15, %c0_16], %37 {strides = array<i32>} : memref<1x2x16x16xf32, #tpu.memory_space<vmem>>, vector<1x1x16x16xf32>,
    return
  }
  func.func @transform_0(%arg0: i32, %arg1: i32) -> (i32, i32, i32) {
    %c0_i32 = arith.constant 0 : i32
    %c0_i32_0 = arith.constant 0 : i32
    return %arg0, %arg1, %c0_i32 : i32, i32, i32
  }
  func.func @transform_1(%arg0: i32, %arg1: i32) -> (i32, i32, i32, i32) {
    %c0_i32 = arith.constant 0 : i32
    %c0_i32_0 = arith.constant 0 : i32
    %c0_i32_1 = arith.constant 0 : i32
    return %arg0, %arg1, %c0_i32, %c0_i32_0 : i32, i32, i32, i32
  }
  func.func @transform_2(%arg0: i32, %arg1: i32) -> (i32, i32, i32, i32) {
    %c0_i32 = arith.constant 0 : i32
    %c0_i32_0 = arith.constant 0 : i32
    %c0_i32_1 = arith.constant 0 : i32
    return %arg0, %c0_i32, %arg1, %c0_i32_0 : i32, i32, i32, i32
  }
}

</mosaic_0001>

<llo_original>
// kernel: tpu_custom_call.1
$region0: #{tpu_custom_call.1}
  #allocation0 [shape = 'u32[]', space=smem, size = 0x4, offset = 0x4, fixed_abs, tag = 'smem constant byte address 0x4 - core index']
  #allocation1 [shape = 'u32[144,128]{1,0:T(1,128)}', space=vmem, size = 0x12000, scoped, tag = 'internal scratch']
  %s0 = inlined_call_operand.hbm [shape: f32[2,16,16], index: 0, kind: input, shape index: {}]
  %s1 = inlined_call_operand.hbm [shape: f32[2,1,2,16], index: 1, kind: input, shape index: {}]
  %s2 = inlined_call_operand.hbm [shape: f32[2,2,16,16], index: 2, kind: output, shape index: {}]
  %s3 = sld [smem:[#allocation0]]
  $region49: #{tpu_custom_call.1} parent=0
    _
  %s5 = ssub.s32 1, %s3
  %s6 = scalar_select 0, %s5, %s3
  $region1: #{tpu_custom_call.1} parent=0
    #allocation2 [shape = 'u8[16384]{0}', space=vmem, size = 0x4000, scoped, tag = 'input window, operand 0']
    #allocation3 [shape = 's32[2]{0}', space=sflag, size = 0x8, scoped, tag = 'scoped memory for tpu_custom_call.1']
    #allocation4 [shape = 's32[2]{0}', space=sflag, size = 0x8, scoped, tag = 'scoped memory for tpu_custom_call.1']
    #allocation5 [shape = 'u8[2048]{0}', space=vmem, size = 0x800, scoped, tag = 'input window, operand 1']
    #allocation6 [shape = 's32[2]{0}', space=sflag, size = 0x8, scoped, tag = 'scoped memory for tpu_custom_call.1']
    #allocation7 [shape = 'u8[32768]{0}', space=vmem, size = 0x8000, scoped, tag = 'output window, operand 0']
    %7 = vsyncpa [#allocation3], 0
    %s8 = scalar_lea.sflag [#allocation3], 1
    %9 = vsyncpa %s8, 0
    %10 = vsyncpa [#allocation6], 0
    %s11 = scalar_lea.sflag [#allocation6], 1
    %12 = vsyncpa %s11, 0
    %13 = vsyncpa [#allocation4], 0
    %s14 = scalar_lea.sflag [#allocation4], 1
    %15 = vsyncpa %s14, 0
    loop: start=0, step=1, limit=4
    $region2: #{tpu_custom_call.1} parent=1 // loop_pre_header
      _
    $region3: #{tpu_custom_call.1} parent=1 // loop_header
      %s17 = sphi 0, %s21
      %p18 = scmp.ge.s32.totalorder %s17, 4
      %s24 = sphi 0, %s36
      %s25 = sphi 0, %s32
      %s26 = sphi 0, %s24
      %s27 = sphi 0, %s25
      %s28 = sphi 0, %s26
      %s29 = sphi 0, %s27
      %s41 = sphi 0, %s43
      %s44 = sphi 0, %s41
      %s45 = sphi 0, %s44
      %s61 = sphi 0, %s45
      %s69 = sphi 0, %s71
      %s72 = sphi 0, %s69
      %s73 = sphi 0, %s72
      %s89 = sphi 0, %s73
      %s97 = sphi 0, %s99
      %s100 = sphi 0, %s97
      %s101 = sphi 0, %s100
      %s117 = sphi 0, %s101
    $region4: #{tpu_custom_call.1} parent=1 // loop_header_branch
      %20 = sbr.rel (%p18) target = $region8
    $region5: #{tpu_custom_call.1} parent=1 // loop_body
      %s22 = ssub.s32 %s17, 1
      %s23 = ssub.s32 %s17, 2
      %s30 = sadd.s32 1, %s25
      %p31 = scmp.ge.s32.totalorder %s30, 1
      %s32 = scalar_select %p31, 0, %s30
      %s33 = sadd.s32 1, %s24
      %s34 = scalar_select %p31, %s33, %s24
      %p35 = scmp.ge.s32.totalorder %s34, 2
      %s36 = scalar_select %p35, 0, %s34
      %s37 = ssub.s32 %s24, %s36
      %s38 = ssub.s32 %s25, %s32
      %s39 = sor.u32 %s37, %s38
      %p40 = scmp.eq.s32.totalorder %s39, 0
      %s42 = sadd.s32 %s41, 1
      %s43 = scalar_select %p40, %s41, %s42
      %p46 = pneg %p40
      %p47 = scmp.eq.s32.totalorder %s17, 1
      %p48 = por %p46, %p47
      %p49 = scmp.ne.s32.totalorder %s41, %s44
      %p50 = scmp.eq.s32.totalorder %s17, 0
      %p51 = por %p49, %p50
      %p52 = scmp.ne.s32.totalorder %s41, %s44
      %p53 = scmp.eq.s32.totalorder %s22, 1
      %p54 = por %p52, %p53
      %p55 = scmp.ne.s32.totalorder %s44, %s45
      %p56 = scmp.eq.s32.totalorder %s22, 0
      %p57 = por %p55, %p56
      %p58 = scmp.ne.s32.totalorder %s44, %s45
      %p59 = scmp.eq.s32.totalorder %s23, 1
      %p60 = por %p58, %p59
      %p62 = scmp.ne.s32.totalorder %s45, %s61
      %p63 = scmp.eq.s32.totalorder %s23, 0
      %p64 = por %p62, %p63
      %s65 = ssub.s32 %s24, %s36
      %s66 = ssub.s32 %s25, %s32
      %s67 = sor.u32 %s65, %s66
      %p68 = scmp.eq.s32.totalorder %s67, 0
      %s70 = sadd.s32 %s69, 1
      %s71 = scalar_select %p68, %s69, %s70
      %p74 = pneg %p68
      %p75 = scmp.eq.s32.totalorder %s17, 1
      %p76 = por %p74, %p75
      %p77 = scmp.ne.s32.totalorder %s69, %s72
      %p78 = scmp.eq.s32.totalorder %s17, 0
      %p79 = por %p77, %p78
      %p80 = scmp.ne.s32.totalorder %s69, %s72
      %p81 = scmp.eq.s32.totalorder %s22, 1
      %p82 = por %p80, %p81
      %p83 = scmp.ne.s32.totalorder %s72, %s73
      %p84 = scmp.eq.s32.totalorder %s22, 0
      %p85 = por %p83, %p84
      %p86 = scmp.ne.s32.totalorder %s72, %s73
      %p87 = scmp.eq.s32.totalorder %s23, 1
      %p88 = por %p86, %p87
      %p90 = scmp.ne.s32.totalorder %s73, %s89
      %p91 = scmp.eq.s32.totalorder %s23, 0
      %p92 = por %p90, %p91
      %s93 = ssub.s32 %s24, %s36
      %s94 = ssub.s32 %s25, %s32
      %s95 = sor.u32 %s93, %s94
      %p96 = scmp.eq.s32.totalorder %s95, 0
      %s98 = sadd.s32 %s97, 1
      %s99 = scalar_select %p96, %s97, %s98
      %p102 = pneg %p96
      %p103 = scmp.eq.s32.totalorder %s17, 1
      %p104 = por %p102, %p103
      %p105 = scmp.ne.s32.totalorder %s97, %s100
      %p106 = scmp.eq.s32.totalorder %s17, 0
      %p107 = por %p105, %p106
      %p108 = scmp.ne.s32.totalorder %s97, %s100
      %p109 = scmp.eq.s32.totalorder %s22, 1
      %p110 = por %p108, %p109
      %p111 = scmp.ne.s32.totalorder %s100, %s101
      %p112 = scmp.eq.s32.totalorder %s22, 0
      %p113 = por %p111, %p112
      %p114 = scmp.ne.s32.totalorder %s100, %s101
      %p115 = scmp.eq.s32.totalorder %s23, 1
      %p116 = por %p114, %p115
      %p118 = scmp.ne.s32.totalorder %s101, %s117
      %p119 = scmp.eq.s32.totalorder %s23, 0
      %p120 = por %p118, %p119
      %p121 = scmp.le.s32.totalorder 1, %s17
      %p122 = scmp.lt.s32.totalorder %s17, 3
      %p123 = pnand %p121, %p122
      %p124 = pneg %p123
      // Predicated region
      $region9: #{tpu_custom_call.1} parent=5 // pred_check
        _
      $region10: #{tpu_custom_call.1} parent=5 // pred_check_branch
        %126 = sbr.rel (%p123) target = $region12
      $region11: #{tpu_custom_call.1} parent=5 // pred_region
        %s127 = ssub.s32 %s17, 1
      $region12: #{tpu_custom_call.1} parent=5 // pred_fallthru
        _
      %p128 = scmp.lt.s32.totalorder %s17, 2
      // Predicated region
      $region13: #{tpu_custom_call.1} parent=5 // pred_check
        %p129 = pneg %p128
      $region14: #{tpu_custom_call.1} parent=5 // pred_check_branch
        %131 = sbr.rel (%p129) target = $region16
      $region15: #{tpu_custom_call.1} parent=5 // pred_region
        // Predicated region
        $region17: #{tpu_custom_call.1} parent=15 // pred_check
          %p132 = pneg %p51
        $region18: #{tpu_custom_call.1} parent=15 // pred_check_branch
          %134 = sbr.rel (%p132) target = $region20
        $region19: #{tpu_custom_call.1} parent=15 // pred_region
          %s135 = sand.u32 %s41, 1
          %s136 = scalar_lea.sflag [#allocation3], %s135
          %s137 = sand.u32 %s41, 1
          %s138 = smul.addr %s137, 16
          %s139 = scalar_lea.vmem [#allocation2], %s138
          %s140 = smul.u32 2, %s25
          %s142 = ssub.s32 256, 256
          %143 = vsyncadd %s136, %s142
          %s144 = smul.addr %s24, 2
          %s145 = sadd.s32 %s140, %s144
          %s146 = smul.addr %s145, 128
          %s147 = scalar_lea.hbm %s0, %s146
          %s148 = sshll.u32 %s139, 4
          %s149 = int_to_ptr.vmem [resolvable:$true] %s148
          %154 = dma.hbm_to_vmem [thread:$0]  %s147, 256, %s149, %s136, 128, 128, 8
        $region20: #{tpu_custom_call.1} parent=15 // pred_fallthru
          _
        // Predicated region
        $region21: #{tpu_custom_call.1} parent=15 // pred_check
          %p155 = pneg %p79
        $region22: #{tpu_custom_call.1} parent=15 // pred_check_branch
          %157 = sbr.rel (%p155) target = $region24
        $region23: #{tpu_custom_call.1} parent=15 // pred_region
          %s158 = sand.u32 %s69, 1
          %s159 = scalar_lea.sflag [#allocation6], %s158
          %s160 = sand.u32 %s69, 1
          %s161 = smul.addr %s160, 2
          %s162 = scalar_lea.vmem [#allocation5], %s161
          %s164 = ssub.s32 32, 32
          %165 = vsyncadd %s159, %s164
          %s166 = sadd.s32 %s25, %s24
          %s167 = smul.addr %s166, 32
          %s168 = scalar_lea.hbm %s1, %s167
          %s170 = sshll.u32 %s162, 4
          %s171 = int_to_ptr.vmem [resolvable:$true] %s170
          %173 = dma.hbm_to_vmem [thread:$0]  %s168, 32, %s171, %s159
        $region24: #{tpu_custom_call.1} parent=15 // pred_fallthru
          _
      $region16: #{tpu_custom_call.1} parent=5 // pred_fallthru
        _
      %p174 = scmp.le.s32.totalorder 1, %s17
      %p175 = scmp.lt.s32.totalorder %s17, 3
      %p176 = pnand %p174, %p175
      %p177 = pneg %p176
      // Predicated region
      $region25: #{tpu_custom_call.1} parent=5 // pred_check
        _
      $region26: #{tpu_custom_call.1} parent=5 // pred_check_branch
        %179 = sbr.rel (%p176) target = $region28
      $region27: #{tpu_custom_call.1} parent=5 // pred_region
        %s180 = ssub.s32 %s17, 1
        %s181 = sand.u32 %s44, 1
        %s182 = scalar_lea.sflag [#allocation3], %s181
        %s183 = sand.u32 %s44, 1
        %s184 = smul.addr %s183, 16
        %s185 = scalar_lea.vmem [#allocation2], %s184
        // Predicated region
        $region29: #{tpu_custom_call.1} parent=27 // pred_check
          %p186 = pneg %p57
        $region30: #{tpu_custom_call.1} parent=27 // pred_check_branch
          %188 = sbr.rel (%p186) target = $region32
        $region31: #{tpu_custom_call.1} parent=27 // pred_region
          %189 = dma.done %s182, 256
        $region32: #{tpu_custom_call.1} parent=27 // pred_fallthru
          _
        %s190 = sand.u32 %s72, 1
        %s191 = scalar_lea.sflag [#allocation6], %s190
        %s192 = sand.u32 %s72, 1
        %s193 = smul.addr %s192, 2
        %s194 = scalar_lea.vmem [#allocation5], %s193
        // Predicated region
        $region33: #{tpu_custom_call.1} parent=27 // pred_check
          %p195 = pneg %p85
        $region34: #{tpu_custom_call.1} parent=27 // pred_check_branch
          %197 = sbr.rel (%p195) target = $region36
        $region35: #{tpu_custom_call.1} parent=27 // pred_region
          %198 = dma.done %s191, 32
        $region36: #{tpu_custom_call.1} parent=27 // pred_fallthru
          _
        %s199 = sand.u32 %s44, 1
        %s200 = scalar_lea.sflag [#allocation3], %s199
        %s201 = sand.u32 %s44, 1
        %s202 = smul.addr %s201, 16
        %s203 = scalar_lea.vmem [#allocation2], %s202
        %p204 = pneg %p57
        %p205 = pneg %p54
        %s206 = sand.u32 %s72, 1
        %s207 = scalar_lea.sflag [#allocation6], %s206
        %s208 = sand.u32 %s72, 1
        %s209 = smul.addr %s208, 2
        %s210 = scalar_lea.vmem [#allocation5], %s209
        %p211 = pneg %p85
        %p212 = pneg %p82
        %p213 = pneg %p113
        %p214 = pneg %p110
        %s215 = sand.u32 %s100, 1
        %s216 = scalar_lea.sflag [#allocation4], %s215
        %s217 = sand.u32 %s100, 1
        %s218 = smul.addr %s217, 32
        %s219 = scalar_lea.vmem [#allocation7], %s218
        %s220 = smul.u32 2, %s27
        %s221 = smul.u32 2, %s27
        %v222 = vld [vmem:[%s185] sm:$0xff]
        %v223 = vld [vmem:[%s185 + $0x8] sm:$0xff]
        %v224 = vld [vmem:[%s194] sm:$0x1]
        %v225 = vld [vmem:[%s194 + $0x1] sm:$0x1]
        %vm228 = vcmask 1040384
        %v229 = vrot.slane %v222, 7
        %v230 = vrot.slane %v223, 7
        %v231 = vsel %vm228, %v229, %v230
        %v234 = vsel %vm228, %v224, %v229
        %vm235 = vcmask 1046528
        %v236 = vrot.slane %v222, 1
        %v237 = vrot.slane %v223, 1
        %v238 = vsel %vm235, %v236, %v237
        %v242 = vrot.slane %v225, 1
        %v244 = vsel %vm235, %v237, %v242
        %v245 = vadd.f32 %v234, %v238
        %v246 = vadd.f32 %v231, %v244
        %v247 = vadd.f32 %v222, %v222
        %v248 = vadd.f32 %v223, %v223
        %v249 = vadd.f32 %v245, %v247
        %v250 = vadd.f32 %v246, %v248
        %v251 = vsub.f32 %v234, %v238
        %v252 = vsub.f32 %v231, %v244
        %255 = vrot.lane.b32.xlu0 %v249, 127
        %v256 = vpop.permute.xlu0 %255
        %257 = vrot.lane.b32.xlu0 %v250, 127
        %v258 = vpop.permute.xlu0 %257
        %261 = vrot.lane.b32.xlu0 %v249, 1
        %v262 = vpop.permute.xlu0 %261
        %263 = vrot.lane.b32.xlu0 %v250, 1
        %v264 = vpop.permute.xlu0 %263
        %vm267 = vcmask 7168
        %v268 = vsel %vm267, %v256, %v262
        %v269 = vsel %vm267, %v258, %v264
        %vm270 = vcmask 121856
        %v271 = vsel %vm270, %v256, %v262
        %v272 = vsel %vm270, %v258, %v264
        %v273 = vsub.f32 %v268, %v271
        %v274 = vsub.f32 %v269, %v272
        %277 = vrot.lane.b32.xlu0 %v251, 127
        %v278 = vpop.permute.xlu0 %277
        %279 = vrot.lane.b32.xlu0 %v252, 127
        %v280 = vpop.permute.xlu0 %279
        %283 = vrot.lane.b32.xlu0 %v251, 1
        %v284 = vpop.permute.xlu0 %283
        %285 = vrot.lane.b32.xlu0 %v252, 1
        %v286 = vpop.permute.xlu0 %285
        %v289 = vsel %vm267, %v278, %v284
        %v290 = vsel %vm267, %v280, %v286
        %v291 = vsel %vm270, %v278, %v284
        %v292 = vsel %vm270, %v280, %v286
        %v293 = vadd.f32 %v289, %v291
        %v294 = vadd.f32 %v290, %v292
        %v295 = vadd.f32 %v251, %v251
        %v296 = vadd.f32 %v252, %v252
        %v297 = vadd.f32 %v293, %v295
        %v298 = vadd.f32 %v294, %v296
        %v299 = vand.u32 2147483647, %v273
        %v300 = vand.u32 2147483647, %v274
        %vm301 = vcmask 130048
        %302 = vst.msk [vmem:[%s219] sm:$0xff] %vm301, %v299
        %303 = vst.msk [vmem:[%s219 + $0x8] sm:$0xff] %vm301, %v300
        %v304 = vand.u32 2147483647, %v297
        %v305 = vand.u32 2147483647, %v298
        %s306 = scalar_lea.vmem %s219, 16 [#allocation7]
        %307 = vst.msk [vmem:[%s306] sm:$0xff] %vm301, %v304
        %308 = vst.msk [vmem:[%s306 + $0x8] sm:$0xff] %vm301, %v305
        %s309 = sand.u32 %s100, 1
        %s310 = scalar_lea.sflag [#allocation4], %s309
        %s311 = sand.u32 %s100, 1
        %s312 = smul.addr %s311, 32
        %s313 = scalar_lea.vmem [#allocation7], %s312
        // Predicated region
        $region37: #{tpu_custom_call.1} parent=27 // pred_check
          %p314 = pneg %p110
        $region38: #{tpu_custom_call.1} parent=27 // pred_check_branch
          %316 = sbr.rel (%p314) target = $region40
        $region39: #{tpu_custom_call.1} parent=27 // pred_region
          %s317 = smul.u32 2, %s27
          %s319 = ssub.s32 512, 512
          %320 = vsyncadd %s310, %s319
          %s321 = smul.addr %s26, 4
          %s322 = sadd.s32 %s317, %s321
          %s323 = smul.addr %s322, 128
          %s324 = scalar_lea.hbm %s2, %s323
          %s325 = sshll.u32 %s313, 4
          %s326 = int_to_ptr.vmem [resolvable:$true] %s325
          %331 = dma.vmem_to_hbm [thread:$0]  %s326, 512, %s324, %s310, 128, 128, 8
        $region40: #{tpu_custom_call.1} parent=27 // pred_fallthru
          _
      $region28: #{tpu_custom_call.1} parent=5 // pred_fallthru
        _
      %p332 = scmp.le.s32.totalorder 2, %s17
      // Predicated region
      $region41: #{tpu_custom_call.1} parent=5 // pred_check
        %p333 = pneg %p332
      $region42: #{tpu_custom_call.1} parent=5 // pred_check_branch
        %335 = sbr.rel (%p333) target = $region44
      $region43: #{tpu_custom_call.1} parent=5 // pred_region
        %s336 = ssub.s32 %s17, 2
        // Predicated region
        $region45: #{tpu_custom_call.1} parent=43 // pred_check
          %p337 = pneg %p116
        $region46: #{tpu_custom_call.1} parent=43 // pred_check_branch
          %339 = sbr.rel (%p337) target = $region48
        $region47: #{tpu_custom_call.1} parent=43 // pred_region
          %s340 = sand.u32 %s101, 1
          %s341 = scalar_lea.sflag [#allocation4], %s340
          %s342 = sand.u32 %s101, 1
          %s343 = smul.addr %s342, 32
          %s344 = scalar_lea.vmem [#allocation7], %s343
          %345 = dma.done %s341, 512
        $region48: #{tpu_custom_call.1} parent=43 // pred_fallthru
          _
      $region44: #{tpu_custom_call.1} parent=5 // pred_fallthru
        _
    $region6: #{tpu_custom_call.1} parent=1 // loop_footer
      %s21 = sadd.s32 1, %s17
    $region7: #{tpu_custom_call.1} parent=1 // loop_footer_branch
      %16 = sbr.rel target = $region3
    $region8: #{tpu_custom_call.1} parent=1 // loop_exit
      _
    %346 = vsyncpa [#allocation3], 1
    %s347 = scalar_lea.sflag [#allocation3], 1
    %348 = vsyncpa %s347, 1
    %349 = vsyncpa [#allocation6], 1
    %s350 = scalar_lea.sflag [#allocation6], 1
    %351 = vsyncpa %s350, 1
    %352 = vsyncpa [#allocation4], 1
    %s353 = scalar_lea.sflag [#allocation4], 1
    %354 = vsyncpa %s353, 1

</llo_original>
